<compile_context>
chip_gen: v7x
topology: tpu7x:2x2x1
jax: 0.10.0
libtpu: 0.0.40
codegen_flags: <defaults>
</compile_context>

<pallas_src>
import numpy as np

import jax
import jax.numpy as jnp
from jax.experimental import pallas as pl
from jax.experimental.pallas import tpu as pltpu


def _round_up(x: int, m: int) -> int:
    return ((x + m - 1) // m) * m


def _make_fused_kernel(P, K_pm, TL, W_out, J_max):
    """P: rows per phase (all decoders, 8-aligned); K_pm = J_max * P."""

    def kernel(x_ref, w_ref, o_ref, y_scr):
        # Hot path: one fused MXU matmul, channel contraction, frames on lanes,
        # (phase, decoder*S) on sublanes.  Result goes straight to VMEM scratch.
        y_scr[:, :TL] = jnp.dot(w_ref[...], x_ref[...],
                                preferred_element_type=jnp.float32)
        # Zero the lane pad: the rolls below must wrap zeros in, and the scratch
        # persists across grid steps so stale data would otherwise leak into the
        # first j lanes of every rolled contribution.  Cost: K_pm x 128 lanes.
        y_scr[:, TL:] = jnp.zeros((K_pm, W_out - TL), jnp.float32)
        # Overlap-add across phases: single full-height accumulator for ALL
        # decoders; shifts run on the XLU, adds on the VPU.
        acc = y_scr[0:P, :]                                   # phase j = 0
        for j in range(1, J_max):
            acc = acc + pltpu.roll(y_scr[j * P:(j + 1) * P, :], shift=j, axis=1)
        # One unmasked, 8-sublane-dense, lane-dense store per tile.
        o_ref[...] = acc

    return kernel


class MixSpeechDecoderPallas:
    """Pallas re-implementation of MixSpeechDecoder.forward (all decoders fused)."""

    def __init__(self, sizes_of_conv_kernels, encoder_out_channels, key, tile_l=2048):
        assert tile_l % 128 == 0 and tile_l >= 128
        sizes = sorted(sizes_of_conv_kernels)
        self.kernel_sizes = sizes
        self.stride = sizes[0] // 2
        self.C = encoder_out_channels
        self.tile_l = tile_l

        S = self.stride
        n_dec = len(sizes)
        self.num_phases = [-(-k // S) for k in sizes]          # J_i = ceil(K_i / S)
        self.J_max = max(self.num_phases)
        self.P = _round_up(n_dec * S, 8)                       # rows per phase
        self.K_pm = self.J_max * self.P                        # fused weight rows

        # Per-decoder PyTorch-style params (f32) + fused phase-major bf16 weight:
        # row [j*P + i*S + r] holds W_i[:, j*S + r] (zero past K_i / past n_dec*S).
        self.params = []
        w_np = np.zeros((self.K_pm, encoder_out_channels), np.float32)
        for i, K in enumerate(sizes):
            kw, kb = jax.random.split(jax.random.fold_in(key, i))
            bound = 1.0 / float(encoder_out_channels * K) ** 0.5
            w = jax.random.uniform(kw, (encoder_out_channels, K),
                                   jnp.float32, -bound, bound)
            b = jax.random.uniform(kb, (1,), jnp.float32, -bound, bound)
            self.params.append((w, b))
            w_host = np.asarray(w)                             # (C, K)
            for j in range(self.num_phases[i]):
                width = min(S, K - j * S)
                row = j * self.P + i * S
                w_np[row:row + width, :] = w_host[:, j * S:j * S + width].T
        self.w_fused = jnp.asarray(w_np).astype(jnp.bfloat16)

    def __call__(self, x_ncl):
        N, C, L = x_ncl.shape
        assert C == self.C
        S, P, J_max, K_pm = self.stride, self.P, self.J_max, self.K_pm

        # TL is always a multiple of 128 (lane-dense stores even for tiny L).
        TL = min(self.tile_l, _round_up(L, 128))
        G = -(-L // TL)
        W_out = _round_up(TL + J_max - 1, 128)                 # per-tile output lanes
        if G > 1:
            assert J_max - 1 <= TL, "tile_l must cover the cross-tile overlap"

        # bf16 halves HBM traffic on the dominant input stream; in a real
        # pipeline this cast fuses with the producer of x.
        x_b = x_ncl.astype(jnp.bfloat16)
        if G * TL != L:
            x_b = jnp.pad(x_b, ((0, 0), (0, 0), (0, G * TL - L)))

        kernel = _make_fused_kernel(P, K_pm, TL, W_out, J_max)

        cost = pl.CostEstimate(
            flops=2 * N * G * TL * C * K_pm,
            transcendentals=0,
            bytes_accessed=(x_b.size * 2 + self.w_fused.size * 2
                            + N * G * P * W_out * 4))

        tiles = pl.pallas_call(
            kernel,
            out_shape=jax.ShapeDtypeStruct((N, G, P, W_out), jnp.float32),
            grid=(N, G),
            in_specs=[
                pl.BlockSpec((None, C, TL), lambda n, g: (n, 0, g)),   # x, NCL layout
                pl.BlockSpec((K_pm, C), lambda n, g: (0, 0)),          # fused W (resident)
            ],
            out_specs=pl.BlockSpec((None, None, P, W_out),
                                   lambda n, g: (n, g, 0, 0)),
            scratch_shapes=[pltpu.VMEM((K_pm, W_out), jnp.float32)],
            compiler_params=pltpu.CompilerParams(
                dimension_semantics=("parallel", "parallel")),
            cost_estimate=cost,
        )(x_b, self.w_fused)

        # Wrapper epilogue on the small output: vectorized seam-add of adjacent
        # L-tiles, (S, frames) -> flat interleave, crop to the ConvTranspose1d
        # length, add bias once.
        outs = []
        Jtail = J_max - 1
        for i, K in enumerate(self.kernel_sizes):
            Ji = self.num_phases[i]
            M = L + Ji - 1                                     # valid output frames
            L_out = (L - 1) * S + K
            t = tiles[:, :, i * S:(i + 1) * S, :]              # (N, G, S, W_out)
            if G == 1:
                frames = t[:, 0]                               # (N, S, W_out)
            else:
                body = t[..., :TL]                             # (N, G, S, TL)
                tail = t[..., TL:TL + Jtail]                   # (N, G, S, Jtail)
                tail = jnp.pad(tail, ((0, 0), (0, 0), (0, 0), (0, TL - Jtail)))
                zblk = jnp.zeros((N, 1, S, TL), t.dtype)
                body = jnp.concatenate([body, zblk], axis=1)   # (N, G+1, S, TL)
                tail = jnp.concatenate([zblk, tail], axis=1)   # (N, G+1, S, TL)
                frames = jnp.transpose(body + tail, (0, 2, 1, 3))
                frames = frames.reshape(N, S, (G + 1) * TL)
            frames = frames[:, :, :M]                          # (N, S, M)
            out = jnp.transpose(frames, (0, 2, 1)).reshape(N, M * S)[:, :L_out]
            out = out + self.params[i][1][0]                   # bias, added once
            outs.append(out[:, None, :])                       # (N, 1, L_out) NCL
        return outs


def _ref_deconv(x_ncl, w_ck, b, S):
    """Plain-JAX reference for ConvTranspose1d(C -> 1, K, stride=S, padding=0)."""
    N, C, L = x_ncl.shape
    K = w_ck.shape[1]
    L_out = (L - 1) * S + K
    y = jnp.einsum('ncl,ck->nlk', x_ncl, w_ck)                 # (N, L, K)
    idx = (jnp.arange(L)[:, None] * S + jnp.arange(K)[None, :]).reshape(-1)
    out = jnp.zeros((N, L_out), jnp.float32).at[:, idx].add(y.reshape(N, L * K))
    return (out + b[0])[:, None, :]


if __name__ == "__main__":
    key = jax.random.PRNGKey(0)
    kx, kp, kx2 = jax.random.split(key, 3)

    # Small shapes consistent with the module: batch=2, encoder channels=32,
    # encoded sequence length L=16, kernel sizes {4, 7, 16} -> stride 2.
    N, C, L = 2, 32, 16
    sizes_of_conv_kernels = [16, 4, 7]

    x = jax.random.normal(kx, (N, C, L), jnp.float32)
    model = MixSpeechDecoderPallas(sizes_of_conv_kernels, C, kp)
    outs = [jax.block_until_ready(o) for o in model(x)]

    xq = x.astype(jnp.bfloat16).astype(jnp.float32)   # same input rounding as kernel
    for (w, b), K, o in zip(model.params, model.kernel_sizes, outs):
        L_out = (L - 1) * model.stride + K
        assert o.shape == (N, 1, L_out), (o.shape, (N, 1, L_out))
        wq = w.astype(jnp.bfloat16).astype(jnp.float32)
        # Tight check against a reference with identical bf16 input rounding.
        rq = _ref_deconv(xq, wq, b, model.stride)
        assert float(jnp.max(jnp.abs(o - rq))) < 1e-3
        # Sanity check against full-precision ConvTranspose1d semantics (slack
        # is the bf16 input-rounding error, not a kernel error).
        r = _ref_deconv(x, w, b, model.stride)
        assert float(jnp.max(jnp.abs(o - r))) < 2e-2

    # Exercise the (N, L-tiles) grid + vectorized seam-combine path (G > 1).
    N2, L2 = 2, 300
    x2 = jax.random.normal(kx2, (N2, C, L2), jnp.float32)
    model2 = MixSpeechDecoderPallas(sizes_of_conv_kernels, C, kp, tile_l=128)
    outs2 = [jax.block_until_ready(o) for o in model2(x2)]

    x2q = x2.astype(jnp.bfloat16).astype(jnp.float32)
    for (w, b), K, o in zip(model2.params, model2.kernel_sizes, outs2):
        L_out = (L2 - 1) * model2.stride + K
        assert o.shape == (N2, 1, L_out), (o.shape, (N2, 1, L_out))
        wq = w.astype(jnp.bfloat16).astype(jnp.float32)
        rq = _ref_deconv(x2q, wq, b, model2.stride)
        assert float(jnp.max(jnp.abs(o - rq))) < 1e-3

    print("KERNEL_OK")
</pallas_src>

<mosaic_0001>
module attributes {stable_mosaic.version = 11 : i64} {
  func.func @kernel(%arg0: i32, %arg1: i32, %arg2: memref<1x32x128xbf16, #tpu.memory_space<vmem>>, %arg3: memref<64x32xbf16, #tpu.memory_space<vmem>>, %arg4: memref<1x1x8x256xf32, #tpu.memory_space<vmem>>, %arg5: memref<64x256xf32, #tpu.memory_space<vmem>>) attributes {dimension_semantics = [#tpu.dimension_semantics<parallel>, #tpu.dimension_semantics<parallel>], iteration_bounds = array<i64: 2, 1>, scalar_prefetch = 0 : i64, scratch_operands = 1 : i64, tpu.core_type = #tpu.core_type<tc>, window_params = [{transform_indices = @transform_0, window_bounds = array<i64: 1, 32, 128>}, {pipeline_mode = #tpu.pipeline_mode<synchronous>, transform_indices = @transform_1, window_bounds = array<i64: 64, 32>}, {transform_indices = @transform_2, window_bounds = array<i64: 1, 1, 8, 256>}]} {
    %c0 = arith.constant 0 : index
    %c0_0 = arith.constant 0 : index
    %0 = vector.load %arg3[%c0, %c0_0] : memref<64x32xbf16, #tpu.memory_space<vmem>>, vector<64x32xbf16>
    %c0_1 = arith.constant 0 : index
    %c0_2 = arith.constant 0 : index
    %c0_3 = arith.constant 0 : index
    %1 = vector.load %arg2[%c0_1, %c0_2, %c0_3] : memref<1x32x128xbf16, #tpu.memory_space<vmem>>, vector<1x32x128xbf16>
    %2 = vector.shape_cast %1 : vector<1x32x128xbf16> to vector<32x128xbf16>
    %cst = arith.constant dense<0.000000e+00> : vector<64x128xf32>
    %3 = tpu.matmul %0, %2, %cst {dimension_numbers = #tpu.dot_dimension_numbers<[1], [0], [0], [1], [0, 0, 1, 1], [], []>} : vector<64x32xbf16>, vector<32x128xbf16>, vector<64x128xf32> -> vector<64x128xf32>
    %c0_4 = arith.constant 0 : index
    %c0_5 = arith.constant 0 : index
    %4 = vector.load %arg5[%c0_4, %c0_5] : memref<64x256xf32, #tpu.memory_space<vmem>>, vector<64x128xf32>
    tpu.vector_store %arg5[%c0_4, %c0_5], %3 {strides = array<i32>} : memref<64x256xf32, #tpu.memory_space<vmem>>, vector<64x128xf32>,
    %cst_6 = arith.constant 0.000000e+00 : f32
    %5 = vector.broadcast %cst_6 : f32 to vector<64x128xf32>
    %c0_7 = arith.constant 0 : index
    %c128 = arith.constant 128 : index
    %6 = vector.load %arg5[%c0_7, %c128] : memref<64x256xf32, #tpu.memory_space<vmem>>, vector<64x128xf32>
    tpu.vector_store %arg5[%c0_7, %c128], %5 {strides = array<i32>} : memref<64x256xf32, #tpu.memory_space<vmem>>, vector<64x128xf32>,
    %c0_8 = arith.constant 0 : index
    %c0_9 = arith.constant 0 : index
    %7 = vector.load %arg5[%c0_8, %c0_9] : memref<64x256xf32, #tpu.memory_space<vmem>>, vector<8x256xf32>
    %c8 = arith.constant 8 : index
    %c0_10 = arith.constant 0 : index
    %8 = vector.load %arg5[%c8, %c0_10] : memref<64x256xf32, #tpu.memory_space<vmem>>, vector<8x256xf32>
    %c1_i32 = arith.constant 1 : i32
    %9 = tpu.dynamic_rotate %8 by %c1_i32 dim 1 : vector<8x256xf32>, i32 -> vector<8x256xf32>
    %10 = arith.addf %7, %9 : vector<8x256xf32>
    %c16 = arith.constant 16 : index
    %c0_11 = arith.constant 0 : index
    %11 = vector.load %arg5[%c16, %c0_11] : memref<64x256xf32, #tpu.memory_space<vmem>>, vector<8x256xf32>
    %c2_i32 = arith.constant 2 : i32
    %12 = tpu.dynamic_rotate %11 by %c2_i32 dim 1 : vector<8x256xf32>, i32 -> vector<8x256xf32>
    %13 = arith.addf %10, %12 : vector<8x256xf32>
    %c24 = arith.constant 24 : index
    %c0_12 = arith.constant 0 : index
    %14 = vector.load %arg5[%c24, %c0_12] : memref<64x256xf32, #tpu.memory_space<vmem>>, vector<8x256xf32>
    %c3_i32 = arith.constant 3 : i32
    %15 = tpu.dynamic_rotate %14 by %c3_i32 dim 1 : vector<8x256xf32>, i32 -> vector<8x256xf32>
    %16 = arith.addf %13, %15 : vector<8x256xf32>
    %c32 = arith.constant 32 : index
    %c0_13 = arith.constant 0 : index
    %17 = vector.load %arg5[%c32, %c0_13] : memref<64x256xf32, #tpu.memory_space<vmem>>, vector<8x256xf32>
    %c4_i32 = arith.constant 4 : i32
    %18 = tpu.dynamic_rotate %17 by %c4_i32 dim 1 : vector<8x256xf32>, i32 -> vector<8x256xf32>
    %19 = arith.addf %16, %18 : vector<8x256xf32>
    %c40 = arith.constant 40 : index
    %c0_14 = arith.constant 0 : index
    %20 = vector.load %arg5[%c40, %c0_14] : memref<64x256xf32, #tpu.memory_space<vmem>>, vector<8x256xf32>
    %c5_i32 = arith.constant 5 : i32
    %21 = tpu.dynamic_rotate %20 by %c5_i32 dim 1 : vector<8x256xf32>, i32 -> vector<8x256xf32>
    %22 = arith.addf %19, %21 : vector<8x256xf32>
    %c48 = arith.constant 48 : index
    %c0_15 = arith.constant 0 : index
    %23 = vector.load %arg5[%c48, %c0_15] : memref<64x256xf32, #tpu.memory_space<vmem>>, vector<8x256xf32>
    %c6_i32 = arith.constant 6 : i32
    %24 = tpu.dynamic_rotate %23 by %c6_i32 dim 1 : vector<8x256xf32>, i32 -> vector<8x256xf32>
    %25 = arith.addf %22, %24 : vector<8x256xf32>
    %c56 = arith.constant 56 : index
    %c0_16 = arith.constant 0 : index
    %26 = vector.load %arg5[%c56, %c0_16] : memref<64x256xf32, #tpu.memory_space<vmem>>, vector<8x256xf32>
    %c7_i32 = arith.constant 7 : i32
    %27 = tpu.dynamic_rotate %26 by %c7_i32 dim 1 : vector<8x256xf32>, i32 -> vector<8x256xf32>
    %28 = arith.addf %25, %27 : vector<8x256xf32>
    %c0_17 = arith.constant 0 : index
    %c0_18 = arith.constant 0 : index
    %c0_19 = arith.constant 0 : index
    %c0_20 = arith.constant 0 : index
    %29 = vector.load %arg4[%c0_17, %c0_18, %c0_19, %c0_20] : memref<1x1x8x256xf32, #tpu.memory_space<vmem>>, vector<1x1x8x256xf32>
    %30 = vector.shape_cast %29 : vector<1x1x8x256xf32> to vector<8x256xf32>
    %31 = vector.shape_cast %28 : vector<8x256xf32> to vector<1x1x8x256xf32>
    tpu.vector_store %arg4[%c0_17, %c0_18, %c0_19, %c0_20], %31 {strides = array<i32>} : memref<1x1x8x256xf32, #tpu.memory_space<vmem>>, vector<1x1x8x256xf32>,
    return
  }
  func.func @transform_0(%arg0: i32, %arg1: i32) -> (i32, i32, i32) {
    %c0_i32 = arith.constant 0 : i32
    %c0_i32_0 = arith.constant 0 : i32
    return %arg0, %c0_i32, %arg1 : i32, i32, i32
  }
  func.func @transform_1(%arg0: i32, %arg1: i32) -> (i32, i32) {
    %c0_i32 = arith.constant 0 : i32
    %c0_i32_0 = arith.constant 0 : i32
    %c0_i32_1 = arith.constant 0 : i32
    return %c0_i32, %c0_i32_0 : i32, i32
  }
  func.func @transform_2(%arg0: i32, %arg1: i32) -> (i32, i32, i32, i32) {
    %c0_i32 = arith.constant 0 : i32
    %c0_i32_0 = arith.constant 0 : i32
    %c0_i32_1 = arith.constant 0 : i32
    return %arg0, %arg1, %c0_i32, %c0_i32_0 : i32, i32, i32, i32
  }
}

</mosaic_0001>

<llo_original>
// kernel: tpu_custom_call.1
$region0: #{tpu_custom_call.1}
  #allocation0 [shape = 'u32[]', space=smem, size = 0x4, offset = 0x4, fixed_abs, tag = 'smem constant byte address 0x4 - core index']
  #allocation1 [shape = 'u32[144,128]{1,0:T(1,128)}', space=vmem, size = 0x12000, scoped, tag = 'internal scratch']
  #allocation2 [shape = 'f32[64,256]{1,0:T(8,128)}', space=vmem, size = 0x10000, scoped, tag = 'scratch operand']
  %s0 = inlined_call_operand.vmem [shape: bf16[2,32,128], index: 0, kind: input, shape index: {}]
  %s1 = inlined_call_operand.vmem [shape: bf16[64,32], index: 1, kind: input, shape index: {}]
  %s2 = inlined_call_operand.hbm [shape: f32[2,1,8,256], index: 2, kind: output, shape index: {}]
  %s3 = sld [smem:[#allocation0]]
  $region41: #{tpu_custom_call.1} parent=0
    _
  %s5 = ssub.s32 1, %s3
  %s6 = scalar_select 0, %s5, %s3
  $region1: #{tpu_custom_call.1} parent=0
    #allocation3 [shape = 'u8[16384]{0}', space=vmem, size = 0x4000, scoped, tag = 'output window, operand 0']
    #allocation4 [shape = 's32[2]{0}', space=sflag, size = 0x8, scoped, tag = 'scoped memory for tpu_custom_call.1']
    %7 = vsyncpa [#allocation4], 0
    %s8 = scalar_lea.sflag [#allocation4], 1
    %9 = vsyncpa %s8, 0
    loop: start=0, step=1, limit=4
    $region2: #{tpu_custom_call.1} parent=1 // loop_pre_header
      _
    $region3: #{tpu_custom_call.1} parent=1 // loop_header
      %s11 = sphi 0, %s15
      %p12 = scmp.ge.s32.totalorder %s11, 4
      %s18 = sphi 0, %s30
      %s19 = sphi 0, %s26
      %s20 = sphi 0, %s18
      %s21 = sphi 0, %s19
      %s22 = sphi 0, %s20
      %s23 = sphi 0, %s21
      %s35 = sphi 0, %s37
      %s38 = sphi 0, %s35
      %s39 = sphi 0, %s38
      %s55 = sphi 0, %s39
      %s59 = sphi 0, %s59
      %s61 = sphi 0, %s59
      %s62 = sphi 0, %s61
      %s76 = sphi 0, %s62
      %s84 = sphi 0, %s86
      %s87 = sphi 0, %s84
      %s88 = sphi 0, %s87
      %s104 = sphi 0, %s88
    $region4: #{tpu_custom_call.1} parent=1 // loop_header_branch
      %14 = sbr.rel (%p12) target = $region8
    $region5: #{tpu_custom_call.1} parent=1 // loop_body
      %s16 = ssub.s32 %s11, 1
      %s17 = ssub.s32 %s11, 2
      %s24 = sadd.s32 1, %s19
      %p25 = scmp.ge.s32.totalorder %s24, 1
      %s26 = scalar_select %p25, 0, %s24
      %s27 = sadd.s32 1, %s18
      %s28 = scalar_select %p25, %s27, %s18
      %p29 = scmp.ge.s32.totalorder %s28, 2
      %s30 = scalar_select %p29, 0, %s28
      %s31 = ssub.s32 %s18, %s30
      %s32 = ssub.s32 %s19, %s26
      %s33 = sor.u32 %s31, %s32
      %p34 = scmp.eq.s32.totalorder %s33, 0
      %s36 = sadd.s32 %s35, 1
      %s37 = scalar_select %p34, %s35, %s36
      %p40 = pneg %p34
      %p41 = scmp.eq.s32.totalorder %s11, 1
      %p42 = por %p40, %p41
      %p43 = scmp.ne.s32.totalorder %s35, %s38
      %p44 = scmp.eq.s32.totalorder %s11, 0
      %p45 = por %p43, %p44
      %p46 = scmp.ne.s32.totalorder %s35, %s38
      %p47 = scmp.eq.s32.totalorder %s16, 1
      %p48 = por %p46, %p47
      %p49 = scmp.ne.s32.totalorder %s38, %s39
      %p50 = scmp.eq.s32.totalorder %s16, 0
      %p51 = por %p49, %p50
      %p52 = scmp.ne.s32.totalorder %s38, %s39
      %p53 = scmp.eq.s32.totalorder %s17, 1
      %p54 = por %p52, %p53
      %p56 = scmp.ne.s32.totalorder %s39, %s55
      %p57 = scmp.eq.s32.totalorder %s17, 0
      %p58 = por %p56, %p57
      %s60 = sadd.s32 %s59, 1
      %p63 = scmp.eq.s32.totalorder %s11, 1
      %p64 = scmp.ne.s32.totalorder %s59, %s61
      %p65 = scmp.eq.s32.totalorder %s11, 0
      %p66 = por %p64, %p65
      %p67 = scmp.ne.s32.totalorder %s59, %s61
      %p68 = scmp.eq.s32.totalorder %s16, 1
      %p69 = por %p67, %p68
      %p70 = scmp.ne.s32.totalorder %s61, %s62
      %p71 = scmp.eq.s32.totalorder %s16, 0
      %p72 = por %p70, %p71
      %p73 = scmp.ne.s32.totalorder %s61, %s62
      %p74 = scmp.eq.s32.totalorder %s17, 1
      %p75 = por %p73, %p74
      %p77 = scmp.ne.s32.totalorder %s62, %s76
      %p78 = scmp.eq.s32.totalorder %s17, 0
      %p79 = por %p77, %p78
      %s80 = ssub.s32 %s18, %s30
      %s81 = ssub.s32 %s19, %s26
      %s82 = sor.u32 %s80, %s81
      %p83 = scmp.eq.s32.totalorder %s82, 0
      %s85 = sadd.s32 %s84, 1
      %s86 = scalar_select %p83, %s84, %s85
      %p89 = pneg %p83
      %p90 = scmp.eq.s32.totalorder %s11, 1
      %p91 = por %p89, %p90
      %p92 = scmp.ne.s32.totalorder %s84, %s87
      %p93 = scmp.eq.s32.totalorder %s11, 0
      %p94 = por %p92, %p93
      %p95 = scmp.ne.s32.totalorder %s84, %s87
      %p96 = scmp.eq.s32.totalorder %s16, 1
      %p97 = por %p95, %p96
      %p98 = scmp.ne.s32.totalorder %s87, %s88
      %p99 = scmp.eq.s32.totalorder %s16, 0
      %p100 = por %p98, %p99
      %p101 = scmp.ne.s32.totalorder %s87, %s88
      %p102 = scmp.eq.s32.totalorder %s17, 1
      %p103 = por %p101, %p102
      %p105 = scmp.ne.s32.totalorder %s88, %s104
      %p106 = scmp.eq.s32.totalorder %s17, 0
      %p107 = por %p105, %p106
      %p108 = scmp.le.s32.totalorder 1, %s11
      %p109 = scmp.lt.s32.totalorder %s11, 3
      %p110 = pnand %p108, %p109
      %p111 = pneg %p110
      // Predicated region
      $region9: #{tpu_custom_call.1} parent=5 // pred_check
        _
      $region10: #{tpu_custom_call.1} parent=5 // pred_check_branch
        %113 = sbr.rel (%p110) target = $region12
      $region11: #{tpu_custom_call.1} parent=5 // pred_region
        %s114 = ssub.s32 %s11, 1
        // Predicated region
        $region13: #{tpu_custom_call.1} parent=11 // pred_check
          %p115 = pneg %p72
        $region14: #{tpu_custom_call.1} parent=11 // pred_check_branch
          %117 = sbr.rel (%p115) target = $region16
        $region15: #{tpu_custom_call.1} parent=11 // pred_region
          _
        $region16: #{tpu_custom_call.1} parent=11 // pred_fallthru
          _
      $region12: #{tpu_custom_call.1} parent=5 // pred_fallthru
        _
      %p118 = scmp.lt.s32.totalorder %s11, 2
      // Predicated region
      $region17: #{tpu_custom_call.1} parent=5 // pred_check
        %p119 = pneg %p118
      $region18: #{tpu_custom_call.1} parent=5 // pred_check_branch
        %121 = sbr.rel (%p119) target = $region20
      $region19: #{tpu_custom_call.1} parent=5 // pred_region
        // Predicated region
        $region21: #{tpu_custom_call.1} parent=19 // pred_check
          %p122 = pneg %p45
        $region22: #{tpu_custom_call.1} parent=19 // pred_check_branch
          %124 = sbr.rel (%p122) target = $region24
        $region23: #{tpu_custom_call.1} parent=19 // pred_region
          %p125 = scmp.lt.s32.totalorder %s18, 1
          %s126 = scalar_select %p125, %s18, 1
          %p127 = scmp.lt.s32.totalorder %s19, 0
          %s128 = scalar_select %p127, %s19, 0
          %s129 = smul.addr %s126, 4
          %s130 = sadd.s32 %s128, %s129
          %s131 = smul.addr %s130, 4
          %s132 = scalar_lea.vmem %s0, %s131
        $region24: #{tpu_custom_call.1} parent=19 // pred_fallthru
          _
      $region20: #{tpu_custom_call.1} parent=5 // pred_fallthru
        _
      %p133 = scmp.le.s32.totalorder 1, %s11
      %p134 = scmp.lt.s32.totalorder %s11, 3
      %p135 = pnand %p133, %p134
      %p136 = pneg %p135
      // Predicated region
      $region25: #{tpu_custom_call.1} parent=5 // pred_check
        _
      $region26: #{tpu_custom_call.1} parent=5 // pred_check_branch
        %138 = sbr.rel (%p135) target = $region28
      $region27: #{tpu_custom_call.1} parent=5 // pred_region
        %s139 = ssub.s32 %s11, 1
        %p140 = scmp.lt.s32.totalorder %s20, 1
        %s141 = scalar_select %p140, %s20, 1
        %p142 = scmp.lt.s32.totalorder %s21, 0
        %s143 = scalar_select %p142, %s21, 0
        %s144 = smul.addr %s141, 4
        %s145 = sadd.s32 %s143, %s144
        %s146 = smul.addr %s145, 4
        %s147 = scalar_lea.vmem %s0, %s146
        %p148 = pneg %p51
        %p149 = pneg %p48
        %p150 = pneg %p72
        %p151 = pneg %p69
        %p152 = pneg %p100
        %p153 = pneg %p97
        %s154 = sand.u32 %s87, 1
        %s155 = scalar_lea.sflag [#allocation4], %s154
        %s156 = sand.u32 %s87, 1
        %s157 = smul.addr %s156, 16
        %s158 = scalar_lea.vmem [#allocation3], %s157
        %p159 = scmp.lt.s32.totalorder %s20, 1
        %s160 = scalar_select %p159, %s20, 1
        %p161 = scmp.lt.s32.totalorder %s21, 0
        %s162 = scalar_select %p161, %s21, 0
        %s163 = smul.addr %s160, 4
        %s164 = sadd.s32 %s162, %s163
        %s165 = smul.addr %s164, 4
        %s166 = scalar_lea.vmem %s0, %s165
        %v168 = vld [vmem:[%s1] sm:$0xf]
        %v169 = vld [vmem:[%s1 + $0x4] sm:$0xf]
        %v170 = vld [vmem:[%s1 + $0x8] sm:$0xf]
        %v171 = vld [vmem:[%s1 + $0xc] sm:$0xf]
        %v172 = vld [vmem:[%s1 + $0x10] sm:$0xf]
        %v173 = vld [vmem:[%s1 + $0x14] sm:$0xf]
        %v174 = vld [vmem:[%s1 + $0x18] sm:$0xf]
        %v175 = vld [vmem:[%s1 + $0x1c] sm:$0xf]
        %v176 = vld [vmem:[%s166] sm:$0xf]
        %v177 = vld [vmem:[%s166 + $0x4] sm:$0xf]
        %v178 = vld [vmem:[%s166 + $0x8] sm:$0xf]
        %v179 = vld [vmem:[%s166 + $0xc] sm:$0xf]
        %v188 = vunpack.c.l.b16 %v168
        %v189 = vunpack.c.l.b16 %v169
        %v190 = vunpack.c.l.b16 %v170
        %v191 = vunpack.c.l.b16 %v171
        %v192 = vunpack.c.l.b16 %v172
        %v193 = vunpack.c.l.b16 %v173
        %v194 = vunpack.c.l.b16 %v174
        %v195 = vunpack.c.l.b16 %v175
        %v196 = vpack.c.b16 %v189, %v188
        %v197 = vpack.c.b16 %v191, %v190
        %v198 = vpack.c.b16 %v193, %v192
        %v199 = vpack.c.b16 %v195, %v194
        %v204 = vunpack.c.l.b16 %v176
        %v205 = vunpack.c.l.b16 %v177
        %v206 = vunpack.c.l.b16 %v178
        %v207 = vunpack.c.l.b16 %v179
        %v208 = vpack.c.b16 %v205, %v204
        %v209 = vpack.c.b16 %v207, %v206
        %vm212 = vcmask 261120
        %v214 = vsel %vm212, %v196, 0
        %v217 = vsel %vm212, %v197, 0
        %v220 = vsel %vm212, %v198, 0
        %v223 = vsel %vm212, %v199, 0
        %225 = vmatprep.subr.bf16.mxu0 0
        %226 = vmatpush1.bf16.msra.mxu0 %v208
        %227 = vmatprep.subr.bf16.mxu0 0
        %228 = vmatpush1.bf16.msra.mxu0 %v209
        %229 = vmatprep.subr.bf16.mxu0 0
        %230 = vmatpush1.bf16.msra.mxu0 0
        %231 = vmatprep.subr.bf16.mxu0 0
        %232 = vmatpush1.bf16.msra.mxu0 0
        %233 = vmatprep.subr.bf16.mxu0 0
        %234 = vmatpush1.bf16.msra.mxu0 0
        %235 = vmatprep.subr.bf16.mxu0 0
        %236 = vmatpush1.bf16.msra.mxu0 0
        %237 = vmatprep.subr.bf16.mxu0 0
        %238 = vmatpush1.bf16.msra.mxu0 0
        %239 = vmatprep.subr.bf16.mxu0 0
        %240 = vmatpush1.bf16.msra.mxu0 0
        %241 = vmatprep.subr.bf16.mxu0 0
        %242 = vmatpush1.bf16.msra.mxu0 0
        %243 = vmatprep.subr.bf16.mxu0 0
        %244 = vmatpush1.bf16.msra.mxu0 0
        %245 = vmatprep.subr.bf16.mxu0 0
        %246 = vmatpush1.bf16.msra.mxu0 0
        %247 = vmatprep.subr.bf16.mxu0 0
        %248 = vmatpush1.bf16.msra.mxu0 0
        %249 = vmatprep.subr.bf16.mxu0 0
        %250 = vmatpush1.bf16.msra.mxu0 0
        %251 = vmatprep.subr.bf16.mxu0 0
        %252 = vmatpush1.bf16.msra.mxu0 0
        %253 = vmatprep.subr.bf16.mxu0 0
        %254 = vmatpush1.bf16.msra.mxu0 0
        %255 = vmatprep.subr.bf16.mxu0 0
        %256 = vmatpush1.bf16.msra.mxu0 0
        %257 = vmatprep.mubr.bf16.mxu0 0
        %258 = vmatmul.mubr.bf16.gmra.mrb[0].mxu0 %v214
        %v259 = vpop.f32.mrb[0].mxu0
        %v260 = vadd.f32 0.0, %v259
        %v261 = vpop.f32.mrb[0].mxu0
        %v262 = vpop.f32.mrb[0].mxu0
        %v263 = vadd.f32 0.0, %v262
        %v264 = vpop.f32.mrb[0].mxu0
        %265 = vmatprep.mubr.bf16.mxu0 0
        %266 = vmatmul.mubr.bf16.gmra.mrb[0].mxu0 %v217
        %v267 = vpop.f32.mrb[0].mxu0
        %v268 = vadd.f32 0.0, %v267
        %v269 = vpop.f32.mrb[0].mxu0
        %v270 = vpop.f32.mrb[0].mxu0
        %v271 = vadd.f32 0.0, %v270
        %v272 = vpop.f32.mrb[0].mxu0
        %273 = vmatprep.mubr.bf16.mxu0 0
        %274 = vmatmul.mubr.bf16.gmra.mrb[0].mxu0 %v220
        %v275 = vpop.f32.mrb[0].mxu0
        %v276 = vadd.f32 0.0, %v275
        %v277 = vpop.f32.mrb[0].mxu0
        %v278 = vpop.f32.mrb[0].mxu0
        %v279 = vadd.f32 0.0, %v278
        %v280 = vpop.f32.mrb[0].mxu0
        %281 = vmatprep.mubr.bf16.mxu0 0
        %282 = vmatmul.mubr.bf16.gmra.mrb[0].mxu0 %v223
        %v283 = vpop.f32.mrb[0].mxu0
        %v284 = vadd.f32 0.0, %v283
        %v285 = vpop.f32.mrb[0].mxu0
        %v286 = vpop.f32.mrb[0].mxu0
        %v287 = vadd.f32 0.0, %v286
        %v288 = vpop.f32.mrb[0].mxu0
        %289 = vdwg.mxu0
        %290 = vst [vmem:[#allocation2] sm:$0xff] %v260
        %291 = vst [vmem:[#allocation2 + $0x10] sm:$0xff] %v263
        %292 = vst [vmem:[#allocation2 + $0x20] sm:$0xff] %v268
        %293 = vst [vmem:[#allocation2 + $0x30] sm:$0xff] %v271
        %294 = vst [vmem:[#allocation2 + $0x40] sm:$0xff] %v276
        %295 = vst [vmem:[#allocation2 + $0x50] sm:$0xff] %v279
        %296 = vst [vmem:[#allocation2 + $0x60] sm:$0xff] %v284
        %297 = vst [vmem:[#allocation2 + $0x70] sm:$0xff] %v287
        %298 = vst [vmem:[#allocation2 + $0x8] sm:$0xff] 0.0
        %299 = vst [vmem:[#allocation2 + $0x18] sm:$0xff] 0.0
        %300 = vst [vmem:[#allocation2 + $0x28] sm:$0xff] 0.0
        %301 = vst [vmem:[#allocation2 + $0x38] sm:$0xff] 0.0
        %302 = vst [vmem:[#allocation2 + $0x48] sm:$0xff] 0.0
        %303 = vst [vmem:[#allocation2 + $0x58] sm:$0xff] 0.0
        %304 = vst [vmem:[#allocation2 + $0x68] sm:$0xff] 0.0
        %305 = vst [vmem:[#allocation2 + $0x78] sm:$0xff] 0.0
        %v306 = vld [vmem:[#allocation2] sm:$0xff]
        %v307 = vld [vmem:[#allocation2 + $0x8] sm:$0xff]
        %v308 = vld [vmem:[#allocation2 + $0x10] sm:$0xff]
        %v309 = vld [vmem:[#allocation2 + $0x18] sm:$0xff]
        %310 = vrot.lane.b32.xlu0 %v308, 1
        %v311 = vpop.permute.xlu0 %310
        %312 = vrot.lane.b32.xlu0 %v309, 1
        %v313 = vpop.permute.xlu0 %312
        %v314 = vlaneseq
        %v315 = vand.u32 %v314, 127
        %vm316 = vcmp.lt.s32.totalorder %v315, 1
        %v317 = vsel %vm316, %v311, %v313
        %v318 = vsel %vm316, %v313, %v311
        %v319 = vadd.f32 %v306, %v318
        %v320 = vadd.f32 %v307, %v317
        %v321 = vld [vmem:[#allocation2 + $0x20] sm:$0xff]
        %v322 = vld [vmem:[#allocation2 + $0x28] sm:$0xff]
        %323 = vrot.lane.b32.xlu0 %v321, 2
        %v324 = vpop.permute.xlu0 %323
        %325 = vrot.lane.b32.xlu0 %v322, 2
        %v326 = vpop.permute.xlu0 %325
        %vm327 = vcmp.lt.s32.totalorder %v315, 2
        %v328 = vsel %vm327, %v324, %v326
        %v329 = vsel %vm327, %v326, %v324
        %v330 = vadd.f32 %v319, %v329
        %v331 = vadd.f32 %v320, %v328
        %v332 = vld [vmem:[#allocation2 + $0x30] sm:$0xff]
        %v333 = vld [vmem:[#allocation2 + $0x38] sm:$0xff]
        %334 = vrot.lane.b32.xlu0 %v332, 3
        %v335 = vpop.permute.xlu0 %334
        %336 = vrot.lane.b32.xlu0 %v333, 3
        %v337 = vpop.permute.xlu0 %336
        %vm338 = vcmp.lt.s32.totalorder %v315, 3
        %v339 = vsel %vm338, %v335, %v337
        %v340 = vsel %vm338, %v337, %v335
        %v341 = vadd.f32 %v330, %v340
        %v342 = vadd.f32 %v331, %v339
        %v343 = vld [vmem:[#allocation2 + $0x40] sm:$0xff]
        %v344 = vld [vmem:[#allocation2 + $0x48] sm:$0xff]
        %345 = vrot.lane.b32.xlu0 %v343, 4
        %v346 = vpop.permute.xlu0 %345
        %347 = vrot.lane.b32.xlu0 %v344, 4
        %v348 = vpop.permute.xlu0 %347
        %vm349 = vcmp.lt.s32.totalorder %v315, 4
        %v350 = vsel %vm349, %v346, %v348
        %v351 = vsel %vm349, %v348, %v346
        %v352 = vadd.f32 %v341, %v351
        %v353 = vadd.f32 %v342, %v350
        %v354 = vld [vmem:[#allocation2 + $0x50] sm:$0xff]
        %v355 = vld [vmem:[#allocation2 + $0x58] sm:$0xff]
        %356 = vrot.lane.b32.xlu0 %v354, 5
        %v357 = vpop.permute.xlu0 %356
        %358 = vrot.lane.b32.xlu0 %v355, 5
        %v359 = vpop.permute.xlu0 %358
        %vm360 = vcmp.lt.s32.totalorder %v315, 5
        %v361 = vsel %vm360, %v357, %v359
        %v362 = vsel %vm360, %v359, %v357
        %v363 = vadd.f32 %v352, %v362
        %v364 = vadd.f32 %v353, %v361
        %v365 = vld [vmem:[#allocation2 + $0x60] sm:$0xff]
        %v366 = vld [vmem:[#allocation2 + $0x68] sm:$0xff]
        %367 = vrot.lane.b32.xlu0 %v365, 6
        %v368 = vpop.permute.xlu0 %367
        %369 = vrot.lane.b32.xlu0 %v366, 6
        %v370 = vpop.permute.xlu0 %369
        %vm371 = vcmp.lt.s32.totalorder %v315, 6
        %v372 = vsel %vm371, %v368, %v370
        %v373 = vsel %vm371, %v370, %v368
        %v374 = vadd.f32 %v363, %v373
        %v375 = vadd.f32 %v364, %v372
        %v376 = vld [vmem:[#allocation2 + $0x70] sm:$0xff]
        %v377 = vld [vmem:[#allocation2 + $0x78] sm:$0xff]
        %378 = vrot.lane.b32.xlu0 %v376, 7
        %v379 = vpop.permute.xlu0 %378
        %380 = vrot.lane.b32.xlu0 %v377, 7
        %v381 = vpop.permute.xlu0 %380
        %vm382 = vcmp.lt.s32.totalorder %v315, 7
        %v383 = vsel %vm382, %v379, %v381
        %v384 = vsel %vm382, %v381, %v379
        %v385 = vadd.f32 %v374, %v384
        %v386 = vadd.f32 %v375, %v383
        %387 = vst [vmem:[%s158] sm:$0xff] %v385
        %388 = vst [vmem:[%s158 + $0x8] sm:$0xff] %v386
        %s389 = sand.u32 %s87, 1
        %s390 = scalar_lea.sflag [#allocation4], %s389
        %s391 = sand.u32 %s87, 1
        %s392 = smul.addr %s391, 16
        %s393 = scalar_lea.vmem [#allocation3], %s392
        // Predicated region
        $region29: #{tpu_custom_call.1} parent=27 // pred_check
          %p394 = pneg %p97
        $region30: #{tpu_custom_call.1} parent=27 // pred_check_branch
          %396 = sbr.rel (%p394) target = $region32
        $region31: #{tpu_custom_call.1} parent=27 // pred_region
          %s398 = ssub.s32 256, 256
          %399 = vsyncadd %s390, %s398
          %s400 = smul.addr %s21, 2
          %s401 = smul.addr %s20, 2
          %s402 = sadd.s32 %s400, %s401
          %s403 = smul.addr %s402, 128
          %s404 = scalar_lea.hbm %s2, %s403
          %s406 = sshll.u32 %s393, 4
          %s407 = int_to_ptr.vmem [resolvable:$true] %s406
          %409 = dma.vmem_to_hbm [thread:$0]  %s407, 256, %s404, %s390
        $region32: #{tpu_custom_call.1} parent=27 // pred_fallthru
          _
      $region28: #{tpu_custom_call.1} parent=5 // pred_fallthru
        _
      %p410 = scmp.le.s32.totalorder 2, %s11
      // Predicated region
      $region33: #{tpu_custom_call.1} parent=5 // pred_check
        %p411 = pneg %p410
      $region34: #{tpu_custom_call.1} parent=5 // pred_check_branch
        %413 = sbr.rel (%p411) target = $region36
      $region35: #{tpu_custom_call.1} parent=5 // pred_region
        %s414 = ssub.s32 %s11, 2
        // Predicated region
        $region37: #{tpu_custom_call.1} parent=35 // pred_check
          %p415 = pneg %p103
        $region38: #{tpu_custom_call.1} parent=35 // pred_check_branch
          %417 = sbr.rel (%p415) target = $region40
        $region39: #{tpu_custom_call.1} parent=35 // pred_region
          %s418 = sand.u32 %s88, 1
          %s419 = scalar_lea.sflag [#allocation4], %s418
          %s420 = sand.u32 %s88, 1
          %s421 = smul.addr %s420, 16
          %s422 = scalar_lea.vmem [#allocation3], %s421
          %423 = dma.done %s419, 256
        $region40: #{tpu_custom_call.1} parent=35 // pred_fallthru
          _
      $region36: #{tpu_custom_call.1} parent=5 // pred_fallthru
        _
    $region6: #{tpu_custom_call.1} parent=1 // loop_footer
      %s15 = sadd.s32 1, %s11
    $region7: #{tpu_custom_call.1} parent=1 // loop_footer_branch
      %10 = sbr.rel target = $region3
    $region8: #{tpu_custom_call.1} parent=1 // loop_exit
      _
    %424 = vsyncpa [#allocation4], 1
    %s425 = scalar_lea.sflag [#allocation4], 1
    %426 = vsyncpa %s425, 1

</llo_original>
